<compile_context>
chip_gen: v5e
topology: v5e:2x2
jax: 0.10.0
libtpu: 0.0.40
codegen_flags: <defaults>
</compile_context>

<pallas_src>
import functools

import jax
import jax.numpy as jnp
from jax.experimental import pallas as pl
from jax.experimental.pallas import tpu as pltpu

LANES = 128
MAX_TILE_R = 4096          # 4096 * 128 * 4 B = 2 MiB per f32 input block
EPS = 1e-8


def _loss_elementwise(p, t, w0, w1):
    """Per-element BCE loss, faithful to the PyTorch module (incl. NaN path)."""
    p = p.astype(jnp.float32)
    t = t.astype(jnp.float32)
    if w0 is not None:
        # torch.clamp -> torch.where(isnan, 0, .) order preserved.
        p = jnp.clip(p, EPS, 1.0 - EPS)
        p = jnp.where(jnp.isnan(p), jnp.zeros_like(p), p)
        c1 = w1 * jnp.log(p)
        c0 = w0 * jnp.log(1.0 - p)
        # == w1*(t*log p) + w0*((1-t)*log(1-p)); one fewer VALU op per element
        # and identical special-value behaviour for the p==0 (NaN input) case.
        return c0 + t * (c1 - c0)
    return t * jnp.log(p) + (1.0 - t) * jnp.log(1.0 - p)


def _wbce_kernel(o_ref, t_ref, psum_ref, acc_ref, *, w0, w1, n_steps, tile_r,
                 full_tiles, needs_mask, n_rows):
    s = pl.program_id(0)            # TensorCore split (size 1 on 1-TC chips)
    j = pl.program_id(1)            # row-tile step within the split
    g = s * n_steps + j             # global (unclamped) tile index

    @pl.when(j == 0)
    def _init():
        acc_ref[...] = jnp.zeros_like(acc_ref)

    loss = _loss_elementwise(o_ref[...], t_ref[...], w0, w1)

    if needs_mask:
        # Only tiles overlapping the ragged row tail (or split-overrun tiles)
        # pay for the mask; full tiles take the cheap branch at runtime.
        @pl.when(g < full_tiles)
        def _full_tile():
            acc_ref[...] += loss

        @pl.when(g >= full_tiles)
        def _tail_tile():
            row = jax.lax.broadcasted_iota(jnp.int32, loss.shape, 0) + g * tile_r
            acc_ref[...] += jnp.where(row < n_rows, loss, 0.0)
    else:
        acc_ref[...] += loss

    @pl.when(j == n_steps - 1)
    def _finalize():
        # One cross-lane/sublane reduction per split; broadcast the scalar
        # over this split's (8,128) output block (plain unmasked store).
        # The wrapper reads element [0, 0] of each split block.
        psum_ref[...] = jnp.zeros_like(psum_ref) + jnp.sum(acc_ref[...])


def _is_v7x():
    try:
        return "v7" in jax.devices()[0].device_kind.lower()
    except Exception:
        return False


def weighted_bce(output_, target_, weights_ar):
    assert output_.shape == target_.shape
    if weights_ar is not None:
        assert len(weights_ar) == 2
        w0, w1 = float(weights_ar[0]), float(weights_ar[1])
    else:
        w0, w1 = None, None

    total = int(output_.size)
    o_flat = jnp.ravel(output_)     # contiguous reshape: free (bitcast)
    t_flat = jnp.ravel(target_)

    rows = total // LANES
    rem = total % LANES

    # <=127 ragged tail elements are handled with plain jnp (tiny); this
    # avoids materializing a padded full copy of both inputs in HBM.
    tail_sum = jnp.float32(0.0)
    if rem:
        o_tail = o_flat[rows * LANES:]
        t_tail = t_flat[rows * LANES:]
        tail_sum = jnp.sum(_loss_elementwise(o_tail, t_tail, w0, w1))

    if rows == 0:   # fewer than 128 elements: nothing left for the kernel
        return -tail_sum / jnp.float32(total)

    if rem:
        # TODO(synk): for ragged totals the prefix slice may materialize one
        # copy of the prefix; a fully zero-copy path needs 1-D blocks + an
        # in-kernel reshape, which has layout hazards on current Mosaic.
        o2d = o_flat[: rows * LANES].reshape(rows, LANES)
        t2d = t_flat[: rows * LANES].reshape(rows, LANES)
    else:
        o2d = o_flat.reshape(rows, LANES)      # free bitcast reshape
        t2d = t_flat.reshape(rows, LANES)

    tile_r = rows if rows <= MAX_TILE_R else MAX_TILE_R
    total_tiles = pl.cdiv(rows, tile_r)

    is_v7x = _is_v7x()
    # Split row tiles across the two TensorCores only where two exist (v7x);
    # on 1-TC chips (v5e/v6e) a split would just add a wasted overrun step.
    n_split = 2 if (is_v7x and total_tiles >= 2) else 1
    n_steps = pl.cdiv(total_tiles, n_split)
    last_tile = total_tiles - 1

    full_tiles = rows // tile_r                     # tiles with no invalid rows
    needs_mask = (n_split * n_steps) > full_tiles

    kernel = functools.partial(
        _wbce_kernel, w0=w0, w1=w1, n_steps=n_steps, tile_r=tile_r,
        full_tiles=full_tiles, needs_mask=needs_mask, n_rows=rows)

    def in_idx(s, j):
        # The overrunning final step of the last split clamps onto a valid
        # tile; its contribution is zeroed by the mask.
        return (jnp.minimum(s * n_steps + j, last_tile), 0)

    n_buf = 3 if is_v7x else 2                      # input pipeline depth
    in_spec = pl.BlockSpec((tile_r, LANES), in_idx)
    if is_v7x:
        try:
            in_spec = pl.BlockSpec((tile_r, LANES), in_idx,
                                   pipeline_mode=pl.Buffered(n_buf))
        except Exception:
            n_buf = 2   # fall back to default double-buffering

    if n_split == 2:
        dim_sem = (getattr(pltpu, "CORE_PARALLEL", "parallel"), "arbitrary")
    else:
        dim_sem = ("arbitrary", "arbitrary")

    block_bytes = tile_r * LANES * o2d.dtype.itemsize
    acc_bytes = tile_r * LANES * 4
    vmem_need = 2 * n_buf * block_bytes + acc_bytes + (1 << 20)
    vmem_limit = int(min(max(vmem_need, 32 << 20), 48 << 20))

    partials = pl.pallas_call(
        kernel,
        out_shape=jax.ShapeDtypeStruct((n_split, 8, LANES), jnp.float32),
        grid_spec=pltpu.PrefetchScalarGridSpec(
            num_scalar_prefetch=0,
            grid=(n_split, n_steps),
            in_specs=[in_spec, in_spec],
            out_specs=pl.BlockSpec((1, 8, LANES), lambda s, j: (s, 0, 0)),
            scratch_shapes=[pltpu.VMEM((tile_r, LANES), jnp.float32)],
        ),
        compiler_params=pltpu.CompilerParams(
            dimension_semantics=dim_sem,
            vmem_limit_bytes=vmem_limit,
        ),
    )(o2d, t2d)

    kernel_sum = jnp.sum(partials[:, 0, 0])
    # torch.neg(torch.mean(loss))
    return -(kernel_sum + tail_sum) / jnp.float32(total)


def weighted_bce_ref(output_, target_, weights_ar):
    """Pure-JAX reference mirroring the PyTorch module literally."""
    output_ = output_.astype(jnp.float32)
    target_ = target_.astype(jnp.float32)
    if weights_ar is not None:
        w0, w1 = float(weights_ar[0]), float(weights_ar[1])
        p = jnp.clip(output_, EPS, 1.0 - EPS)
        p = jnp.where(jnp.isnan(p), jnp.zeros_like(p), p)
        loss = w1 * (target_ * jnp.log(p)) + w0 * ((1.0 - target_) * jnp.log(1.0 - p))
    else:
        loss = target_ * jnp.log(output_) + (1.0 - target_) * jnp.log(1.0 - output_)
    return -jnp.mean(loss)


if __name__ == "__main__":
    weights_ar = (0.4, 0.6)    # the class-weight pair passed to __init__
    key = jax.random.PRNGKey(0)
    k1, k2, k3, k4 = jax.random.split(key, 4)

    # 1) NCHW-style predictions; 128-aligned element count (2*4*16*16 = 2048).
    out1 = jax.random.uniform(k1, (2, 4, 16, 16), dtype=jnp.float32)
    tgt1 = (jax.random.uniform(k2, (2, 4, 16, 16)) > 0.5).astype(jnp.float32)
    loss1 = jax.block_until_ready(weighted_bce(out1, tgt1, weights_ar))
    ref1 = weighted_bce_ref(out1, tgt1, weights_ar)
    assert jnp.allclose(loss1, ref1, rtol=1e-5, atol=1e-6), (loss1, ref1)

    # 2) Ragged element count (2*3*67 = 402: 3 full lane-rows + 18-elem tail).
    out2 = jax.random.uniform(k3, (2, 3, 67), dtype=jnp.float32)
    tgt2 = (jax.random.uniform(k4, (2, 3, 67)) > 0.5).astype(jnp.float32)
    loss2 = jax.block_until_ready(weighted_bce(out2, tgt2, weights_ar))
    ref2 = weighted_bce_ref(out2, tgt2, weights_ar)
    assert jnp.allclose(loss2, ref2, rtol=1e-5, atol=1e-6), (loss2, ref2)

    # 3) Unweighted path (weights_ar=None); keep predictions strictly in (0,1).
    out3 = out1 * 0.98 + 0.01
    loss3 = jax.block_until_ready(weighted_bce(out3, tgt1, None))
    ref3 = weighted_bce_ref(out3, tgt1, None)
    assert jnp.allclose(loss3, ref3, rtol=1e-5, atol=1e-6), (loss3, ref3)

    print("KERNEL_OK")
</pallas_src>

<mosaic_0001>
module attributes {stable_mosaic.version = 11 : i64} {
  func.func @_wbce_kernel(%arg0: i32, %arg1: i32, %arg2: memref<16x128xf32, #tpu.memory_space<vmem>>, %arg3: memref<16x128xf32, #tpu.memory_space<vmem>>, %arg4: memref<1x8x128xf32, #tpu.memory_space<vmem>>, %arg5: memref<16x128xf32, #tpu.memory_space<vmem>>) attributes {dimension_semantics = [#tpu.dimension_semantics<arbitrary>, #tpu.dimension_semantics<arbitrary>], iteration_bounds = array<i64: 1, 1>, scalar_prefetch = 0 : i64, scratch_operands = 1 : i64, tpu.core_type = #tpu.core_type<tc>, window_params = [{transform_indices = @transform_0, window_bounds = array<i64: 16, 128>}, {transform_indices = @transform_1, window_bounds = array<i64: 16, 128>}, {transform_indices = @transform_2, window_bounds = array<i64: 1, 8, 128>}]} {
    %c0_i32 = arith.constant 0 : i32
    %0 = arith.cmpi eq, %arg1, %c0_i32 : i32
    %1 = arith.extui %0 : i1 to i32
    %c0_i32_0 = arith.constant 0 : i32
    %2 = arith.cmpi ne, %1, %c0_i32_0 : i32
    scf.if %2 {
      %cst_15 = arith.constant 0.000000e+00 : f32
      %29 = vector.broadcast %cst_15 : f32 to vector<16x128xf32>
      %c0_16 = arith.constant 0 : index
      %c0_17 = arith.constant 0 : index
      %30 = vector.load %arg5[%c0_16, %c0_17] : memref<16x128xf32, #tpu.memory_space<vmem>>, vector<16x128xf32>
      tpu.vector_store %arg5[%c0_16, %c0_17], %29 {strides = array<i32>} : memref<16x128xf32, #tpu.memory_space<vmem>>, vector<16x128xf32>,
    } else {
    }
    %c0 = arith.constant 0 : index
    %c0_1 = arith.constant 0 : index
    %3 = vector.load %arg2[%c0, %c0_1] : memref<16x128xf32, #tpu.memory_space<vmem>>, vector<16x128xf32>
    %c0_2 = arith.constant 0 : index
    %c0_3 = arith.constant 0 : index
    %4 = vector.load %arg3[%c0_2, %c0_3] : memref<16x128xf32, #tpu.memory_space<vmem>>, vector<16x128xf32>
    %cst = arith.constant 9.99999993E-9 : f32
    %cst_4 = arith.constant 1.000000e+00 : f32
    %5 = vector.broadcast %cst : f32 to vector<16x128xf32>
    %6 = arith.maximumf %5, %3 : vector<16x128xf32>
    %7 = vector.broadcast %cst_4 : f32 to vector<16x128xf32>
    %8 = arith.minimumf %7, %6 : vector<16x128xf32>
    %9 = arith.cmpf one, %8, %8 : vector<16x128xf32>
    %cst_5 = arith.constant 0.000000e+00 : f32
    %10 = vector.broadcast %cst_5 : f32 to vector<16x128xf32>
    %11 = arith.select %9, %10, %8 : vector<16x128xi1>, vector<16x128xf32>
    %12 = math.log %11 : vector<16x128xf32>
    %cst_6 = arith.constant 6.000000e-01 : f32
    %13 = vector.broadcast %cst_6 : f32 to vector<16x128xf32>
    %14 = arith.mulf %13, %12 : vector<16x128xf32>
    %cst_7 = arith.constant 1.000000e+00 : f32
    %15 = vector.broadcast %cst_7 : f32 to vector<16x128xf32>
    %16 = arith.subf %15, %11 : vector<16x128xf32>
    %17 = math.log %16 : vector<16x128xf32>
    %cst_8 = arith.constant 4.000000e-01 : f32
    %18 = vector.broadcast %cst_8 : f32 to vector<16x128xf32>
    %19 = arith.mulf %18, %17 : vector<16x128xf32>
    %20 = arith.subf %14, %19 : vector<16x128xf32>
    %21 = arith.mulf %4, %20 : vector<16x128xf32>
    %22 = arith.addf %19, %21 : vector<16x128xf32>
    %c0_9 = arith.constant 0 : index
    %c0_10 = arith.constant 0 : index
    %23 = vector.load %arg5[%c0_9, %c0_10] : memref<16x128xf32, #tpu.memory_space<vmem>>, vector<16x128xf32>
    %24 = arith.addf %23, %22 : vector<16x128xf32>
    %c0_11 = arith.constant 0 : index
    %c0_12 = arith.constant 0 : index
    %25 = vector.load %arg5[%c0_11, %c0_12] : memref<16x128xf32, #tpu.memory_space<vmem>>, vector<16x128xf32>
    tpu.vector_store %arg5[%c0_11, %c0_12], %24 {strides = array<i32>} : memref<16x128xf32, #tpu.memory_space<vmem>>, vector<16x128xf32>,
    %c0_i32_13 = arith.constant 0 : i32
    %26 = arith.cmpi eq, %arg1, %c0_i32_13 : i32
    %27 = arith.extui %26 : i1 to i32
    %c0_i32_14 = arith.constant 0 : i32
    %28 = arith.cmpi ne, %27, %c0_i32_14 : i32
    scf.if %28 {
      %cst_15 = arith.constant 0.000000e+00 : f32
      %29 = vector.broadcast %cst_15 : f32 to vector<1x8x128xf32>
      %c0_16 = arith.constant 0 : index
      %c0_17 = arith.constant 0 : index
      %30 = vector.load %arg5[%c0_16, %c0_17] : memref<16x128xf32, #tpu.memory_space<vmem>>, vector<16x128xf32>
      %31 = vector.shape_cast %30 : vector<16x128xf32> to vector<1x16x128xf32>
      %cst_18 = arith.constant dense<0.000000e+00> : vector<1xf32>
      %32 = vector.multi_reduction <add>, %31, %cst_18 [1, 2] : vector<1x16x128xf32> to vector<1xf32>
      %33 = vector.shape_cast %32 : vector<1xf32> to vector<1x1x1xf32>
      %34 = vector.extract %33[0, 0, 0] : f32 from vector<1x1x1xf32>
      %35 = vector.broadcast %34 : f32 to vector<1x8x128xf32>
      %36 = arith.addf %29, %35 : vector<1x8x128xf32>
      %c0_19 = arith.constant 0 : index
      %c0_20 = arith.constant 0 : index
      %c0_21 = arith.constant 0 : index
      %37 = vector.load %arg4[%c0_19, %c0_20, %c0_21] : memref<1x8x128xf32, #tpu.memory_space<vmem>>, vector<1x8x128xf32>
      tpu.vector_store %arg4[%c0_19, %c0_20, %c0_21], %36 {strides = array<i32>} : memref<1x8x128xf32, #tpu.memory_space<vmem>>, vector<1x8x128xf32>,
    } else {
    }
    return
  }
  func.func @transform_0(%arg0: i32, %arg1: i32) -> (i32, i32) {
    %c1_i32 = arith.constant 1 : i32
    %0 = arith.muli %arg0, %c1_i32 : i32
    %1 = arith.addi %0, %arg1 : i32
    %c0_i32 = arith.constant 0 : i32
    %2 = arith.minsi %1, %c0_i32 : i32
    %c0_i32_0 = arith.constant 0 : i32
    %c0_i32_1 = arith.constant 0 : i32
    return %2, %c0_i32_0 : i32, i32
  }
  func.func @transform_1(%arg0: i32, %arg1: i32) -> (i32, i32) {
    %c1_i32 = arith.constant 1 : i32
    %0 = arith.muli %arg0, %c1_i32 : i32
    %1 = arith.addi %0, %arg1 : i32
    %c0_i32 = arith.constant 0 : i32
    %2 = arith.minsi %1, %c0_i32 : i32
    %c0_i32_0 = arith.constant 0 : i32
    %c0_i32_1 = arith.constant 0 : i32
    return %2, %c0_i32_0 : i32, i32
  }
  func.func @transform_2(%arg0: i32, %arg1: i32) -> (i32, i32, i32) {
    %c0_i32 = arith.constant 0 : i32
    %c0_i32_0 = arith.constant 0 : i32
    %c0_i32_1 = arith.constant 0 : i32
    return %arg0, %c0_i32, %c0_i32_0 : i32, i32, i32
  }
}

</mosaic_0001>

<llo_original>
// kernel: tpu_custom_call.1
$region0: #{tpu_custom_call.1}
  #allocation0 [shape = 'u32[]', space=smem, size = 0x4, offset = 0x4, fixed_abs, tag = 'smem constant byte address 0x4 - core index']
  #allocation1 [shape = 'u32[72,128]{1,0:T(1,128)}', space=vmem, size = 0x9000, scoped, tag = 'internal scratch']
  #allocation2 [shape = 'f32[16,128]{1,0:T(8,128)}', space=vmem, size = 0x2000, scoped, tag = 'scratch operand']
  %s0 = inlined_call_operand.hbm [shape: f32[16,128], index: 0, kind: input, shape index: {}]
  %s1 = inlined_call_operand.hbm [shape: f32[16,128], index: 1, kind: input, shape index: {}]
  %s2 = inlined_call_operand.hbm [shape: f32[1,8,128], index: 2, kind: output, shape index: {}]
  %s3 = sld [smem:[#allocation0]]
  $region34: #{tpu_custom_call.1} parent=0
    _
  %s5 = ssub.s32 1, %s3
  %s6 = scalar_select 0, %s5, %s3
  $region1: #{tpu_custom_call.1} parent=0
    #allocation3 [shape = 'u8[8192]{0}', space=vmem, size = 0x2000, scoped, tag = 'input window, operand 0, single buffered']
    #allocation4 [shape = 's32[1]{0}', space=sflag, size = 0x4, scoped, tag = 'scoped memory for tpu_custom_call.1']
    #allocation5 [shape = 's32[1]{0}', space=sflag, size = 0x4, scoped, tag = 'scoped memory for tpu_custom_call.1']
    #allocation6 [shape = 'u8[8192]{0}', space=vmem, size = 0x2000, scoped, tag = 'input window, operand 1, single buffered']
    #allocation7 [shape = 's32[1]{0}', space=sflag, size = 0x4, scoped, tag = 'scoped memory for tpu_custom_call.1']
    #allocation8 [shape = 'u8[4096]{0}', space=vmem, size = 0x1000, scoped, tag = 'output window, operand 0, single buffered']
    %7 = vsyncpa [#allocation4], 0
    %8 = vsyncpa [#allocation7], 0
    %9 = vsyncpa [#allocation5], 0
    // Predicated region
    $region2: #{tpu_custom_call.1} parent=1 // pred_check
      _
    $region3: #{tpu_custom_call.1} parent=1 // pred_check_branch
      %11 = sbr.rel (0) target = $region5
    $region4: #{tpu_custom_call.1} parent=1 // pred_region
      %s12 = sadd.s32 0, 0
      %p13 = scmp.lt.s32.totalorder %s12, 0
      %s14 = scalar_select %p13, %s12, 0
      %s15 = smul.u32 2, %s14
      %17 = vsyncadd [#allocation4], 0
      %s18 = smul.addr %s15, 8
      %s19 = scalar_lea.hbm %s0, %s18
      %s20 = sshll.u32 %s19, 4
      %s21 = int_to_ptr.hbm [resolvable:$true] %s20
      %s22 = sshll.u32 [#allocation3], 4
      %s23 = int_to_ptr.vmem [resolvable:$true] %s22
      %28 = dma.hbm_to_vmem [thread:$0]  %s21, 256, %s23, [#allocation4], 128, 128, 8
    $region5: #{tpu_custom_call.1} parent=1 // pred_fallthru
      _
    // Predicated region
    $region6: #{tpu_custom_call.1} parent=1 // pred_check
      _
    $region7: #{tpu_custom_call.1} parent=1 // pred_check_branch
      %30 = sbr.rel (0) target = $region9
    $region8: #{tpu_custom_call.1} parent=1 // pred_region
      %s31 = sadd.s32 0, 0
      %p32 = scmp.lt.s32.totalorder %s31, 0
      %s33 = scalar_select %p32, %s31, 0
      %s34 = smul.u32 2, %s33
      %36 = vsyncadd [#allocation7], 0
      %s37 = smul.addr %s34, 8
      %s38 = scalar_lea.hbm %s1, %s37
      %s39 = sshll.u32 %s38, 4
      %s40 = int_to_ptr.hbm [resolvable:$true] %s39
      %s41 = sshll.u32 [#allocation6], 4
      %s42 = int_to_ptr.vmem [resolvable:$true] %s41
      %47 = dma.hbm_to_vmem [thread:$0]  %s40, 256, %s42, [#allocation7], 128, 128, 8
    $region9: #{tpu_custom_call.1} parent=1 // pred_fallthru
      _
    // Predicated region
    $region10: #{tpu_custom_call.1} parent=1 // pred_check
      _
    $region11: #{tpu_custom_call.1} parent=1 // pred_check_branch
      %49 = sbr.rel (0) target = $region13
    $region12: #{tpu_custom_call.1} parent=1 // pred_region
      %51 = dma.done [#allocation4], 256
    $region13: #{tpu_custom_call.1} parent=1 // pred_fallthru
      _
    // Predicated region
    $region14: #{tpu_custom_call.1} parent=1 // pred_check
      _
    $region15: #{tpu_custom_call.1} parent=1 // pred_check_branch
      %53 = sbr.rel (0) target = $region17
    $region16: #{tpu_custom_call.1} parent=1 // pred_region
      %55 = dma.done [#allocation7], 256
    $region17: #{tpu_custom_call.1} parent=1 // pred_fallthru
      _
    %s56 = sadd.s32 0, 0
    %p57 = scmp.lt.s32.totalorder %s56, 0
    %s58 = scalar_select %p57, %s56, 0
    %s59 = smul.u32 2, %s58
    %s60 = sadd.s32 0, 0
    %p61 = scmp.lt.s32.totalorder %s60, 0
    %s62 = scalar_select %p61, %s60, 0
    %s63 = smul.u32 2, %s62
    %p64 = scmp.eq.s32.totalorder 0, 0
    // Predicated region
    $region18: #{tpu_custom_call.1} parent=1 // pred_check
      %p65 = pneg %p64
    $region19: #{tpu_custom_call.1} parent=1 // pred_check_branch
      %67 = sbr.rel (%p65) target = $region21
    $region20: #{tpu_custom_call.1} parent=1 // pred_region
      %68 = vst [vmem:[#allocation2] sm:$0xff] 0.0
      %69 = vst [vmem:[#allocation2 + $0x8] sm:$0xff] 0.0
    $region21: #{tpu_custom_call.1} parent=1 // pred_fallthru
      _
    %v70 = vld [vmem:[#allocation3] sm:$0xff]
    %v71 = vld [vmem:[#allocation3 + $0x8] sm:$0xff]
    %v72 = vld [vmem:[#allocation6] sm:$0xff]
    %v73 = vld [vmem:[#allocation6 + $0x8] sm:$0xff]
    %v74 = vmax.f32 %v70, 1e-08
    %v75 = vmax.f32 %v71, 1e-08
    %v76 = vmin.f32 %v74, 1.0
    %v77 = vmin.f32 %v75, 1.0
    %vm78 = vcmp.ne.f32.partialorder %v76, %v76
    %vm79 = vcmp.ne.f32.partialorder %v77, %v77
    %v80 = vsel %vm78, 0.0, %v76
    %v81 = vsel %vm79, 0.0, %v77
    %v82 = vlog2.pop %v80
    %v83 = vmul.f32 %v82, 0.6931472
    %v84 = vlog2.pop %v81
    %v85 = vmul.f32 %v84, 0.6931472
    %v86 = vmul.f32 %v83, 0.6
    %v87 = vmul.f32 %v85, 0.6
    %v88 = vsub.f32 1.0, %v80
    %v89 = vsub.f32 1.0, %v81
    %v90 = vlog2.pop %v88
    %v91 = vmul.f32 %v90, 0.6931472
    %v92 = vlog2.pop %v89
    %v93 = vmul.f32 %v92, 0.6931472
    %v94 = vmul.f32 %v91, 0.4
    %v95 = vmul.f32 %v93, 0.4
    %v96 = vsub.f32 %v86, %v94
    %v97 = vsub.f32 %v87, %v95
    %v98 = vmul.f32 %v72, %v96
    %v99 = vmul.f32 %v73, %v97
    %v100 = vadd.f32 %v94, %v98
    %v101 = vadd.f32 %v95, %v99
    %v102 = vld [vmem:[#allocation2] sm:$0xff]
    %v103 = vld [vmem:[#allocation2 + $0x8] sm:$0xff]
    %v104 = vadd.f32 %v102, %v100
    %v105 = vadd.f32 %v103, %v101
    %106 = vst [vmem:[#allocation2] sm:$0xff] %v104
    %107 = vst [vmem:[#allocation2 + $0x8] sm:$0xff] %v105
    // Predicated region
    $region22: #{tpu_custom_call.1} parent=1 // pred_check
      %p108 = pneg %p64
    $region23: #{tpu_custom_call.1} parent=1 // pred_check_branch
      %110 = sbr.rel (%p108) target = $region25
    $region24: #{tpu_custom_call.1} parent=1 // pred_region
      %v111 = vld [vmem:[#allocation2] sm:$0xff]
      %v112 = vld [vmem:[#allocation2 + $0x8] sm:$0xff]
      %v113 = vadd.f32 %v111, %v112
      %114 = vadd.xlane.f32.xlu0 %v113
      %v115 = vpop.xlane.xlu0 %114
      %v116 = vrot.slane %v115, 4
      %v117 = vadd.f32 %v115, %v116
      %v118 = vrot.slane %v117, 2
      %v119 = vadd.f32 %v117, %v118
      %v120 = vrot.slane %v119, 1
      %v121 = vadd.f32 %v119, %v120
      %s122 = vtos %v121
      %v123 = vstv %s122
      %v124 = vadd.f32 %v123, 0.0
      %125 = vst [vmem:[#allocation8] sm:$0xff] %v124
    $region25: #{tpu_custom_call.1} parent=1 // pred_fallthru
      _
    // Predicated region
    $region26: #{tpu_custom_call.1} parent=1 // pred_check
      _
    $region27: #{tpu_custom_call.1} parent=1 // pred_check_branch
      %127 = sbr.rel (0) target = $region29
    $region28: #{tpu_custom_call.1} parent=1 // pred_region
      %129 = vsyncadd [#allocation5], 0
      %s131 = sshll.u32 [#allocation8], 4
      %s132 = int_to_ptr.vmem [resolvable:$true] %s131
      %s133 = sshll.u32 %s2, 4
      %s134 = int_to_ptr.hbm [resolvable:$true] %s133
      %136 = dma.vmem_to_hbm [thread:$0]  %s132, 128, %s134, [#allocation5]
    $region29: #{tpu_custom_call.1} parent=1 // pred_fallthru
      _
    // Predicated region
    $region30: #{tpu_custom_call.1} parent=1 // pred_check
      _
    $region31: #{tpu_custom_call.1} parent=1 // pred_check_branch
      %138 = sbr.rel (0) target = $region33
    $region32: #{tpu_custom_call.1} parent=1 // pred_region
      %140 = dma.done [#allocation5], 128
    $region33: #{tpu_custom_call.1} parent=1 // pred_fallthru
      _
    %141 = vsyncpa [#allocation4], 1
    %142 = vsyncpa [#allocation7], 1
    %143 = vsyncpa [#allocation5], 1

</llo_original>
